<compile_context>
chip_gen: v7x
topology: tpu7x:2x2x1
jax: 0.10.0
libtpu: 0.0.40
codegen_flags: <defaults>
</compile_context>

<pallas_src>
import jax
import jax.numpy as jnp
from jax.experimental import pallas as pl
from jax.experimental.pallas import tpu as pltpu


def _global_agg_kernel(nbr_ref, wgt_ref, sess_ref, w1a_ref, w1b_ref, w2_ref, out_ref):
    # nbr_ref : (TM, N*D)  neighbor hidden, lane-dense
    # wgt_ref : (TM, N)    neighbor weights (the "cat" column multiplying w_1[D])
    # sess_ref: (TM, D)    session hidden
    # w1a_ref : (D, D)     w_1[:D]
    # w1b_ref : (1, D)     w_1[D]
    # w2_ref  : (D, 1)     w_2
    # out_ref : (TM, D)
    D = sess_ref.shape[1]
    N = wgt_ref.shape[1]

    nbr_big = nbr_ref[...].astype(jnp.float32)   # (TM, N*D), one bulk lane-dense load
    wgt = wgt_ref[...].astype(jnp.float32)       # (TM, N)
    sess = sess_ref[...].astype(jnp.float32)     # (TM, D)
    w1a = w1a_ref[...].astype(jnp.float32)       # (D, D)
    w1b = w1b_ref[...].astype(jnp.float32)       # (1, D)
    w2 = w2_ref[...].astype(jnp.float32)         # (D, 1)

    # Unrolled neighbor loop (N is small & static): per-neighbor (TM, D) slabs.
    nbr_slabs = []
    logits = []
    for n in range(N):
        nbr_n = nbr_big[:, n * D:(n + 1) * D]                              # (TM, D)
        nbr_slabs.append(nbr_n)
        prod = sess * nbr_n                                                # gate
        h = jnp.dot(prod, w1a, preferred_element_type=jnp.float32)         # (TM, D)
        h = h + wgt[:, n:n + 1] * w1b                                      # "+ weight * w_1[D]"
        h = jnp.where(h >= 0.0, h, 0.2 * h)                                # leaky_relu(0.2)
        logits.append(jnp.dot(h, w2, preferred_element_type=jnp.float32))  # (TM, 1)

    # Numerically-stable softmax across the N unrolled logits (pure VPU/EUP).
    m = logits[0]
    for n in range(1, N):
        m = jnp.maximum(m, logits[n])
    exps = [jnp.exp(l - m) for l in logits]
    denom = exps[0]
    for n in range(1, N):
        denom = denom + exps[n]
    inv_denom = pl.reciprocal(denom, approx=True)                          # EUP slot

    # Weighted aggregation over neighbors (VPU multiply-adds, stays (TM, D)).
    acc = (exps[0] * inv_denom) * nbr_slabs[0]
    for n in range(1, N):
        acc = acc + (exps[n] * inv_denom) * nbr_slabs[n]
    out_ref[...] = acc.astype(out_ref.dtype)


def _pick_tm(M, tm_max, sublane, min_grid=8):
    """Largest row tile that divides M, is a multiple of `sublane`, and (for
    large M) keeps >= min_grid grid steps so the parallel axis can shard across
    megacore / v7x's two TensorCores."""
    target = min(tm_max, max(sublane, -(-M // min_grid)), M)
    for tm in range(target, sublane - 1, -1):
        if M % tm == 0 and tm % sublane == 0:
            return tm
    return M  # fallback: single full-extent block (always a legal block shape)


def global_aggregator(neighbor_hidden, neighbor_weight, sess_hidden, w_1, w_2,
                      *, tm_max=1024):
    B, S, N, D = neighbor_hidden.shape
    M = B * S

    sublane = 16 if neighbor_hidden.dtype == jnp.bfloat16 else 8
    tm = _pick_tm(M, tm_max, sublane)

    # Lane-dense views: N*D sits on the lane axis (e.g. 4*32 = 128 lanes).
    nbr = neighbor_hidden.reshape(M, N * D)
    wgt = neighbor_weight.reshape(M, N)
    sess = sess_hidden.reshape(M, D)
    w1a = w_1[:D, :]          # (D, D)
    w1b = w_1[D:D + 1, :]     # (1, D)
    w2 = w_2.reshape(D, 1)    # (D, 1)

    out = pl.pallas_call(
        _global_agg_kernel,
        out_shape=jax.ShapeDtypeStruct((M, D), neighbor_hidden.dtype),
        grid_spec=pltpu.PrefetchScalarGridSpec(
            num_scalar_prefetch=0,
            grid=(M // tm,),
            in_specs=[
                # NOTE(v5e): if profiling shows exposed DMA, add
                # pipeline_mode=pl.Buffered(3) to this neighbor spec.
                pl.BlockSpec((tm, N * D), lambda i: (i, 0)),
                pl.BlockSpec((tm, N), lambda i: (i, 0)),
                pl.BlockSpec((tm, D), lambda i: (i, 0)),
                pl.BlockSpec((D, D), lambda i: (0, 0)),
                pl.BlockSpec((1, D), lambda i: (0, 0)),
                pl.BlockSpec((D, 1), lambda i: (0, 0)),
            ],
            out_specs=pl.BlockSpec((tm, D), lambda i: (i, 0)),
        ),
        compiler_params=pltpu.CompilerParams(
            dimension_semantics=("parallel",)),
    )(nbr, wgt, sess, w1a, w1b, w2)
    return out.reshape(B, S, D)


def _reference(neighbor_hidden, neighbor_weight, sess_hidden, w_1, w_2):
    # Direct transcription of the PyTorch forward (for verification only).
    N = neighbor_hidden.shape[2]
    sess_rep = jnp.broadcast_to(
        sess_hidden[:, :, None, :],
        sess_hidden.shape[:2] + (N,) + sess_hidden.shape[-1:])
    cat = jnp.concatenate([sess_rep * neighbor_hidden,
                           neighbor_weight[..., None]], axis=-1)
    alpha = jnp.matmul(cat, w_1)
    alpha = jnp.where(alpha >= 0, alpha, 0.2 * alpha)
    alpha = jnp.matmul(alpha, w_2)[..., 0]
    alpha = jax.nn.softmax(alpha, axis=-1)[..., None]
    return jnp.sum(alpha * neighbor_hidden, axis=-2)


if __name__ == "__main__":
    B, S, N, D = 2, 8, 4, 32   # batch, seq, neighbors, hidden dim

    key = jax.random.PRNGKey(0)
    k1, k2, k3, k4, k5 = jax.random.split(key, 5)
    neighbor_hidden = jax.random.normal(k1, (B, S, N, D), jnp.float32)
    neighbor_weight = jax.random.normal(k2, (B, S, N), jnp.float32)
    sess_hidden = jax.random.normal(k3, (B, S, D), jnp.float32)
    # deterministic synthetic parameters (module leaves them uninitialized)
    w_1 = 0.1 * jax.random.normal(k4, (D + 1, D), jnp.float32)
    w_2 = 0.1 * jax.random.normal(k5, (D, 1), jnp.float32)

    ref = _reference(neighbor_hidden, neighbor_weight, sess_hidden, w_1, w_2)

    # f32 path
    out = global_aggregator(neighbor_hidden, neighbor_weight, sess_hidden, w_1, w_2)
    out = jax.block_until_ready(out)
    assert out.shape == (B, S, D)
    # tolerance accounts for pl.reciprocal(approx=True) in the softmax
    assert jnp.allclose(out, ref, atol=5e-3, rtol=5e-3), "f32 mismatch vs reference"

    # bf16 activation path (halves HBM traffic on real sizes; weights stay f32,
    # all in-kernel math and accumulation is f32).  Loose tolerance = bf16 quant.
    out_bf16 = global_aggregator(
        neighbor_hidden.astype(jnp.bfloat16),
        neighbor_weight.astype(jnp.bfloat16),
        sess_hidden.astype(jnp.bfloat16),
        w_1, w_2)
    out_bf16 = jax.block_until_ready(out_bf16)
    assert out_bf16.shape == (B, S, D)
    out_bf16_f32 = out_bf16.astype(jnp.float32)
    assert bool(jnp.all(jnp.isfinite(out_bf16_f32)))
    assert jnp.allclose(out_bf16_f32, ref, atol=1e-1, rtol=1e-1), \
        "bf16 smoke-test mismatch vs reference"

    print("KERNEL_OK")
</pallas_src>

<mosaic_0001>
module attributes {stable_mosaic.version = 11 : i64} {
  func.func @_global_agg_kernel(%arg0: i32, %arg1: memref<8x128xf32, #tpu.memory_space<vmem>>, %arg2: memref<8x4xf32, #tpu.memory_space<vmem>>, %arg3: memref<8x32xf32, #tpu.memory_space<vmem>>, %arg4: memref<32x32xf32, #tpu.memory_space<vmem>>, %arg5: memref<1x32xf32, #tpu.memory_space<vmem>>, %arg6: memref<32x1xf32, #tpu.memory_space<vmem>>, %arg7: memref<8x32xf32, #tpu.memory_space<vmem>>) attributes {dimension_semantics = [#tpu.dimension_semantics<parallel>], iteration_bounds = array<i64: 2>, scalar_prefetch = 0 : i64, scratch_operands = 0 : i64, tpu.core_type = #tpu.core_type<tc>, window_params = [{transform_indices = @transform_0, window_bounds = array<i64: 8, 128>}, {transform_indices = @transform_1, window_bounds = array<i64: 8, 4>}, {transform_indices = @transform_2, window_bounds = array<i64: 8, 32>}, {pipeline_mode = #tpu.pipeline_mode<synchronous>, transform_indices = @transform_3, window_bounds = array<i64: 32, 32>}, {pipeline_mode = #tpu.pipeline_mode<synchronous>, transform_indices = @transform_4, window_bounds = array<i64: 1, 32>}, {pipeline_mode = #tpu.pipeline_mode<synchronous>, transform_indices = @transform_5, window_bounds = array<i64: 32, 1>}, {transform_indices = @transform_6, window_bounds = array<i64: 8, 32>}]} {
    %c0 = arith.constant 0 : index
    %c0_0 = arith.constant 0 : index
    %0 = vector.load %arg1[%c0, %c0_0] : memref<8x128xf32, #tpu.memory_space<vmem>>, vector<8x128xf32>
    %c0_1 = arith.constant 0 : index
    %c0_2 = arith.constant 0 : index
    %1 = vector.load %arg2[%c0_1, %c0_2] : memref<8x4xf32, #tpu.memory_space<vmem>>, vector<8x4xf32>
    %c0_3 = arith.constant 0 : index
    %c0_4 = arith.constant 0 : index
    %2 = vector.load %arg3[%c0_3, %c0_4] : memref<8x32xf32, #tpu.memory_space<vmem>>, vector<8x32xf32>
    %c0_5 = arith.constant 0 : index
    %c0_6 = arith.constant 0 : index
    %3 = vector.load %arg4[%c0_5, %c0_6] : memref<32x32xf32, #tpu.memory_space<vmem>>, vector<32x32xf32>
    %c0_7 = arith.constant 0 : index
    %c0_8 = arith.constant 0 : index
    %4 = vector.load %arg5[%c0_7, %c0_8] : memref<1x32xf32, #tpu.memory_space<vmem>>, vector<1x32xf32>
    %c0_9 = arith.constant 0 : index
    %c0_10 = arith.constant 0 : index
    %5 = vector.load %arg6[%c0_9, %c0_10] : memref<32x1xf32, #tpu.memory_space<vmem>>, vector<32x1xf32>
    %6 = vector.extract_strided_slice %0 {offsets = [0, 0], sizes = [8, 32], strides = [1, 1]} : vector<8x128xf32> to vector<8x32xf32>
    %7 = arith.mulf %2, %6 : vector<8x32xf32>
    %cst = arith.constant dense<0.000000e+00> : vector<8x32xf32>
    %8 = tpu.matmul %7, %3, %cst {dimension_numbers = #tpu.dot_dimension_numbers<[1], [0], [0], [1], [0, 0, 1, 1], [], []>} : vector<8x32xf32>, vector<32x32xf32>, vector<8x32xf32> -> vector<8x32xf32>
    %9 = vector.extract_strided_slice %1 {offsets = [0, 0], sizes = [8, 1], strides = [1, 1]} : vector<8x4xf32> to vector<8x1xf32>
    %10 = vector.broadcast %9 : vector<8x1xf32> to vector<8x32xf32>
    %11 = vector.broadcast %4 : vector<1x32xf32> to vector<8x32xf32>
    %12 = arith.mulf %10, %11 : vector<8x32xf32>
    %13 = arith.addf %8, %12 : vector<8x32xf32>
    %cst_11 = arith.constant 0.000000e+00 : f32
    %14 = vector.broadcast %cst_11 : f32 to vector<8x32xf32>
    %15 = arith.cmpf oge, %13, %14 : vector<8x32xf32>
    %cst_12 = arith.constant 2.000000e-01 : f32
    %16 = vector.broadcast %cst_12 : f32 to vector<8x32xf32>
    %17 = arith.mulf %16, %13 : vector<8x32xf32>
    %18 = arith.select %15, %13, %17 : vector<8x32xi1>, vector<8x32xf32>
    %cst_13 = arith.constant dense<0.000000e+00> : vector<8x1xf32>
    %19 = tpu.matmul %18, %5, %cst_13 {dimension_numbers = #tpu.dot_dimension_numbers<[1], [0], [0], [1], [0, 0, 1, 1], [], []>} : vector<8x32xf32>, vector<32x1xf32>, vector<8x1xf32> -> vector<8x1xf32>
    %20 = vector.extract_strided_slice %0 {offsets = [0, 32], sizes = [8, 32], strides = [1, 1]} : vector<8x128xf32> to vector<8x32xf32>
    %21 = arith.mulf %2, %20 : vector<8x32xf32>
    %cst_14 = arith.constant dense<0.000000e+00> : vector<8x32xf32>
    %22 = tpu.matmul %21, %3, %cst_14 {dimension_numbers = #tpu.dot_dimension_numbers<[1], [0], [0], [1], [0, 0, 1, 1], [], []>} : vector<8x32xf32>, vector<32x32xf32>, vector<8x32xf32> -> vector<8x32xf32>
    %23 = vector.extract_strided_slice %1 {offsets = [0, 1], sizes = [8, 1], strides = [1, 1]} : vector<8x4xf32> to vector<8x1xf32>
    %24 = vector.broadcast %23 : vector<8x1xf32> to vector<8x32xf32>
    %25 = vector.broadcast %4 : vector<1x32xf32> to vector<8x32xf32>
    %26 = arith.mulf %24, %25 : vector<8x32xf32>
    %27 = arith.addf %22, %26 : vector<8x32xf32>
    %cst_15 = arith.constant 0.000000e+00 : f32
    %28 = vector.broadcast %cst_15 : f32 to vector<8x32xf32>
    %29 = arith.cmpf oge, %27, %28 : vector<8x32xf32>
    %cst_16 = arith.constant 2.000000e-01 : f32
    %30 = vector.broadcast %cst_16 : f32 to vector<8x32xf32>
    %31 = arith.mulf %30, %27 : vector<8x32xf32>
    %32 = arith.select %29, %27, %31 : vector<8x32xi1>, vector<8x32xf32>
    %cst_17 = arith.constant dense<0.000000e+00> : vector<8x1xf32>
    %33 = tpu.matmul %32, %5, %cst_17 {dimension_numbers = #tpu.dot_dimension_numbers<[1], [0], [0], [1], [0, 0, 1, 1], [], []>} : vector<8x32xf32>, vector<32x1xf32>, vector<8x1xf32> -> vector<8x1xf32>
    %34 = vector.extract_strided_slice %0 {offsets = [0, 64], sizes = [8, 32], strides = [1, 1]} : vector<8x128xf32> to vector<8x32xf32>
    %35 = arith.mulf %2, %34 : vector<8x32xf32>
    %cst_18 = arith.constant dense<0.000000e+00> : vector<8x32xf32>
    %36 = tpu.matmul %35, %3, %cst_18 {dimension_numbers = #tpu.dot_dimension_numbers<[1], [0], [0], [1], [0, 0, 1, 1], [], []>} : vector<8x32xf32>, vector<32x32xf32>, vector<8x32xf32> -> vector<8x32xf32>
    %37 = vector.extract_strided_slice %1 {offsets = [0, 2], sizes = [8, 1], strides = [1, 1]} : vector<8x4xf32> to vector<8x1xf32>
    %38 = vector.broadcast %37 : vector<8x1xf32> to vector<8x32xf32>
    %39 = vector.broadcast %4 : vector<1x32xf32> to vector<8x32xf32>
    %40 = arith.mulf %38, %39 : vector<8x32xf32>
    %41 = arith.addf %36, %40 : vector<8x32xf32>
    %cst_19 = arith.constant 0.000000e+00 : f32
    %42 = vector.broadcast %cst_19 : f32 to vector<8x32xf32>
    %43 = arith.cmpf oge, %41, %42 : vector<8x32xf32>
    %cst_20 = arith.constant 2.000000e-01 : f32
    %44 = vector.broadcast %cst_20 : f32 to vector<8x32xf32>
    %45 = arith.mulf %44, %41 : vector<8x32xf32>
    %46 = arith.select %43, %41, %45 : vector<8x32xi1>, vector<8x32xf32>
    %cst_21 = arith.constant dense<0.000000e+00> : vector<8x1xf32>
    %47 = tpu.matmul %46, %5, %cst_21 {dimension_numbers = #tpu.dot_dimension_numbers<[1], [0], [0], [1], [0, 0, 1, 1], [], []>} : vector<8x32xf32>, vector<32x1xf32>, vector<8x1xf32> -> vector<8x1xf32>
    %48 = vector.extract_strided_slice %0 {offsets = [0, 96], sizes = [8, 32], strides = [1, 1]} : vector<8x128xf32> to vector<8x32xf32>
    %49 = arith.mulf %2, %48 : vector<8x32xf32>
    %cst_22 = arith.constant dense<0.000000e+00> : vector<8x32xf32>
    %50 = tpu.matmul %49, %3, %cst_22 {dimension_numbers = #tpu.dot_dimension_numbers<[1], [0], [0], [1], [0, 0, 1, 1], [], []>} : vector<8x32xf32>, vector<32x32xf32>, vector<8x32xf32> -> vector<8x32xf32>
    %51 = vector.extract_strided_slice %1 {offsets = [0, 3], sizes = [8, 1], strides = [1, 1]} : vector<8x4xf32> to vector<8x1xf32>
    %52 = vector.broadcast %51 : vector<8x1xf32> to vector<8x32xf32>
    %53 = vector.broadcast %4 : vector<1x32xf32> to vector<8x32xf32>
    %54 = arith.mulf %52, %53 : vector<8x32xf32>
    %55 = arith.addf %50, %54 : vector<8x32xf32>
    %cst_23 = arith.constant 0.000000e+00 : f32
    %56 = vector.broadcast %cst_23 : f32 to vector<8x32xf32>
    %57 = arith.cmpf oge, %55, %56 : vector<8x32xf32>
    %cst_24 = arith.constant 2.000000e-01 : f32
    %58 = vector.broadcast %cst_24 : f32 to vector<8x32xf32>
    %59 = arith.mulf %58, %55 : vector<8x32xf32>
    %60 = arith.select %57, %55, %59 : vector<8x32xi1>, vector<8x32xf32>
    %cst_25 = arith.constant dense<0.000000e+00> : vector<8x1xf32>
    %61 = tpu.matmul %60, %5, %cst_25 {dimension_numbers = #tpu.dot_dimension_numbers<[1], [0], [0], [1], [0, 0, 1, 1], [], []>} : vector<8x32xf32>, vector<32x1xf32>, vector<8x1xf32> -> vector<8x1xf32>
    %62 = arith.maximumf %19, %33 : vector<8x1xf32>
    %63 = arith.maximumf %62, %47 : vector<8x1xf32>
    %64 = arith.maximumf %63, %61 : vector<8x1xf32>
    %65 = arith.subf %19, %64 : vector<8x1xf32>
    %66 = math.exp %65 : vector<8x1xf32>
    %67 = arith.subf %33, %64 : vector<8x1xf32>
    %68 = math.exp %67 : vector<8x1xf32>
    %69 = arith.subf %47, %64 : vector<8x1xf32>
    %70 = math.exp %69 : vector<8x1xf32>
    %71 = arith.subf %61, %64 : vector<8x1xf32>
    %72 = math.exp %71 : vector<8x1xf32>
    %73 = arith.addf %66, %68 : vector<8x1xf32>
    %74 = arith.addf %73, %70 : vector<8x1xf32>
    %75 = arith.addf %74, %72 : vector<8x1xf32>
    %76 = tpu.reciprocal %75 {approx = true} : vector<8x1xf32> -> vector<8x1xf32>
    %77 = arith.mulf %66, %76 : vector<8x1xf32>
    %78 = vector.broadcast %77 : vector<8x1xf32> to vector<8x32xf32>
    %79 = arith.mulf %78, %6 : vector<8x32xf32>
    %80 = arith.mulf %68, %76 : vector<8x1xf32>
    %81 = vector.broadcast %80 : vector<8x1xf32> to vector<8x32xf32>
    %82 = arith.mulf %81, %20 : vector<8x32xf32>
    %83 = arith.addf %79, %82 : vector<8x32xf32>
    %84 = arith.mulf %70, %76 : vector<8x1xf32>
    %85 = vector.broadcast %84 : vector<8x1xf32> to vector<8x32xf32>
    %86 = arith.mulf %85, %34 : vector<8x32xf32>
    %87 = arith.addf %83, %86 : vector<8x32xf32>
    %88 = arith.mulf %72, %76 : vector<8x1xf32>
    %89 = vector.broadcast %88 : vector<8x1xf32> to vector<8x32xf32>
    %90 = arith.mulf %89, %48 : vector<8x32xf32>
    %91 = arith.addf %87, %90 : vector<8x32xf32>
    %c0_26 = arith.constant 0 : index
    %c0_27 = arith.constant 0 : index
    %92 = vector.load %arg7[%c0_26, %c0_27] : memref<8x32xf32, #tpu.memory_space<vmem>>, vector<8x32xf32>
    tpu.vector_store %arg7[%c0_26, %c0_27], %91 {strides = array<i32>} : memref<8x32xf32, #tpu.memory_space<vmem>>, vector<8x32xf32>,
    return
  }
  func.func @transform_0(%arg0: i32) -> (i32, i32) {
    %c0_i32 = arith.constant 0 : i32
    %c0_i32_0 = arith.constant 0 : i32
    return %arg0, %c0_i32 : i32, i32
  }
  func.func @transform_1(%arg0: i32) -> (i32, i32) {
    %c0_i32 = arith.constant 0 : i32
    %c0_i32_0 = arith.constant 0 : i32
    return %arg0, %c0_i32 : i32, i32
  }
  func.func @transform_2(%arg0: i32) -> (i32, i32) {
    %c0_i32 = arith.constant 0 : i32
    %c0_i32_0 = arith.constant 0 : i32
    return %arg0, %c0_i32 : i32, i32
  }
  func.func @transform_3(%arg0: i32) -> (i32, i32) {
    %c0_i32 = arith.constant 0 : i32
    %c0_i32_0 = arith.constant 0 : i32
    %c0_i32_1 = arith.constant 0 : i32
    return %c0_i32, %c0_i32_0 : i32, i32
  }
  func.func @transform_4(%arg0: i32) -> (i32, i32) {
    %c0_i32 = arith.constant 0 : i32
    %c0_i32_0 = arith.constant 0 : i32
    %c0_i32_1 = arith.constant 0 : i32
    return %c0_i32, %c0_i32_0 : i32, i32
  }
  func.func @transform_5(%arg0: i32) -> (i32, i32) {
    %c0_i32 = arith.constant 0 : i32
    %c0_i32_0 = arith.constant 0 : i32
    %c0_i32_1 = arith.constant 0 : i32
    return %c0_i32, %c0_i32_0 : i32, i32
  }
  func.func @transform_6(%arg0: i32) -> (i32, i32) {
    %c0_i32 = arith.constant 0 : i32
    %c0_i32_0 = arith.constant 0 : i32
    return %arg0, %c0_i32 : i32, i32
  }
}

</mosaic_0001>

<llo_original>
// kernel: tpu_custom_call.1
$region0: #{tpu_custom_call.1}
  #allocation0 [shape = 'u32[]', space=smem, size = 0x4, offset = 0x4, fixed_abs, tag = 'smem constant byte address 0x4 - core index']
  #allocation1 [shape = 'u32[144,128]{1,0:T(1,128)}', space=vmem, size = 0x12000, scoped, tag = 'internal scratch']
  %s0 = inlined_call_operand.vmem [shape: f32[16,128], index: 0, kind: input, shape index: {}]
  %s1 = inlined_call_operand.vmem [shape: f32[16,4], index: 1, kind: input, shape index: {}]
  %s2 = inlined_call_operand.vmem [shape: f32[16,32], index: 2, kind: input, shape index: {}]
  %s3 = inlined_call_operand.vmem [shape: f32[32,32], index: 3, kind: input, shape index: {}]
  %s4 = inlined_call_operand.vmem [shape: f32[1,32], index: 4, kind: input, shape index: {}]
  %s5 = inlined_call_operand.vmem [shape: f32[32,1], index: 5, kind: input, shape index: {}]
  %s6 = inlined_call_operand.hbm [shape: f32[16,32], index: 6, kind: output, shape index: {}]
  %s7 = sld [smem:[#allocation0]]
  $region57: #{tpu_custom_call.1} parent=0
    _
  %s9 = ssub.s32 1, %s7
  %s10 = scalar_select 0, %s9, %s7
  $region1: #{tpu_custom_call.1} parent=0
    #allocation2 [shape = 'u8[8192]{0}', space=vmem, size = 0x2000, scoped, tag = 'output window, operand 0']
    #allocation3 [shape = 's32[2]{0}', space=sflag, size = 0x8, scoped, tag = 'scoped memory for tpu_custom_call.1']
    %11 = vsyncpa [#allocation3], 0
    %s12 = scalar_lea.sflag [#allocation3], 1
    %13 = vsyncpa %s12, 0
    loop: start=0, step=1, limit=4
    $region2: #{tpu_custom_call.1} parent=1 // loop_pre_header
      _
    $region3: #{tpu_custom_call.1} parent=1 // loop_header
      %s15 = sphi 0, %s19
      %p16 = scmp.ge.s32.totalorder %s15, 4
      %s25 = sphi 0, %s27
      %s28 = sphi 0, %s25
      %s29 = sphi 0, %s28
      %s45 = sphi 0, %s29
      %s51 = sphi 0, %s53
      %s54 = sphi 0, %s51
      %s55 = sphi 0, %s54
      %s71 = sphi 0, %s55
      %s77 = sphi 0, %s79
      %s80 = sphi 0, %s77
      %s81 = sphi 0, %s80
      %s97 = sphi 0, %s81
      %s101 = sphi 0, %s101
      %s103 = sphi 0, %s101
      %s104 = sphi 0, %s103
      %s118 = sphi 0, %s104
      %s122 = sphi 0, %s122
      %s124 = sphi 0, %s122
      %s125 = sphi 0, %s124
      %s139 = sphi 0, %s125
      %s143 = sphi 0, %s143
      %s145 = sphi 0, %s143
      %s146 = sphi 0, %s145
      %s160 = sphi 0, %s146
      %s166 = sphi 0, %s168
      %s169 = sphi 0, %s166
      %s170 = sphi 0, %s169
      %s186 = sphi 0, %s170
    $region4: #{tpu_custom_call.1} parent=1 // loop_header_branch
      %18 = sbr.rel (%p16) target = $region8
    $region5: #{tpu_custom_call.1} parent=1 // loop_body
      %s20 = ssub.s32 %s15, 1
      %s21 = ssub.s32 %s15, 2
      %s22 = sadd.s32 %s15, 1
      %s23 = ssub.s32 %s15, %s22
      %p24 = scmp.eq.s32.totalorder %s23, 0
      %s26 = sadd.s32 %s25, 1
      %s27 = scalar_select %p24, %s25, %s26
      %p30 = pneg %p24
      %p31 = scmp.eq.s32.totalorder %s15, 1
      %p32 = por %p30, %p31
      %p33 = scmp.ne.s32.totalorder %s25, %s28
      %p34 = scmp.eq.s32.totalorder %s15, 0
      %p35 = por %p33, %p34
      %p36 = scmp.ne.s32.totalorder %s25, %s28
      %p37 = scmp.eq.s32.totalorder %s20, 1
      %p38 = por %p36, %p37
      %p39 = scmp.ne.s32.totalorder %s28, %s29
      %p40 = scmp.eq.s32.totalorder %s20, 0
      %p41 = por %p39, %p40
      %p42 = scmp.ne.s32.totalorder %s28, %s29
      %p43 = scmp.eq.s32.totalorder %s21, 1
      %p44 = por %p42, %p43
      %p46 = scmp.ne.s32.totalorder %s29, %s45
      %p47 = scmp.eq.s32.totalorder %s21, 0
      %p48 = por %p46, %p47
      %s49 = ssub.s32 %s15, %s22
      %p50 = scmp.eq.s32.totalorder %s49, 0
      %s52 = sadd.s32 %s51, 1
      %s53 = scalar_select %p50, %s51, %s52
      %p56 = pneg %p50
      %p57 = scmp.eq.s32.totalorder %s15, 1
      %p58 = por %p56, %p57
      %p59 = scmp.ne.s32.totalorder %s51, %s54
      %p60 = scmp.eq.s32.totalorder %s15, 0
      %p61 = por %p59, %p60
      %p62 = scmp.ne.s32.totalorder %s51, %s54
      %p63 = scmp.eq.s32.totalorder %s20, 1
      %p64 = por %p62, %p63
      %p65 = scmp.ne.s32.totalorder %s54, %s55
      %p66 = scmp.eq.s32.totalorder %s20, 0
      %p67 = por %p65, %p66
      %p68 = scmp.ne.s32.totalorder %s54, %s55
      %p69 = scmp.eq.s32.totalorder %s21, 1
      %p70 = por %p68, %p69
      %p72 = scmp.ne.s32.totalorder %s55, %s71
      %p73 = scmp.eq.s32.totalorder %s21, 0
      %p74 = por %p72, %p73
      %s75 = ssub.s32 %s15, %s22
      %p76 = scmp.eq.s32.totalorder %s75, 0
      %s78 = sadd.s32 %s77, 1
      %s79 = scalar_select %p76, %s77, %s78
      %p82 = pneg %p76
      %p83 = scmp.eq.s32.totalorder %s15, 1
      %p84 = por %p82, %p83
      %p85 = scmp.ne.s32.totalorder %s77, %s80
      %p86 = scmp.eq.s32.totalorder %s15, 0
      %p87 = por %p85, %p86
      %p88 = scmp.ne.s32.totalorder %s77, %s80
      %p89 = scmp.eq.s32.totalorder %s20, 1
      %p90 = por %p88, %p89
      %p91 = scmp.ne.s32.totalorder %s80, %s81
      %p92 = scmp.eq.s32.totalorder %s20, 0
      %p93 = por %p91, %p92
      %p94 = scmp.ne.s32.totalorder %s80, %s81
      %p95 = scmp.eq.s32.totalorder %s21, 1
      %p96 = por %p94, %p95
      %p98 = scmp.ne.s32.totalorder %s81, %s97
      %p99 = scmp.eq.s32.totalorder %s21, 0
      %p100 = por %p98, %p99
      %s102 = sadd.s32 %s101, 1
      %p105 = scmp.eq.s32.totalorder %s15, 1
      %p106 = scmp.ne.s32.totalorder %s101, %s103
      %p107 = scmp.eq.s32.totalorder %s15, 0
      %p108 = por %p106, %p107
      %p109 = scmp.ne.s32.totalorder %s101, %s103
      %p110 = scmp.eq.s32.totalorder %s20, 1
      %p111 = por %p109, %p110
      %p112 = scmp.ne.s32.totalorder %s103, %s104
      %p113 = scmp.eq.s32.totalorder %s20, 0
      %p114 = por %p112, %p113
      %p115 = scmp.ne.s32.totalorder %s103, %s104
      %p116 = scmp.eq.s32.totalorder %s21, 1
      %p117 = por %p115, %p116
      %p119 = scmp.ne.s32.totalorder %s104, %s118
      %p120 = scmp.eq.s32.totalorder %s21, 0
      %p121 = por %p119, %p120
      %s123 = sadd.s32 %s122, 1
      %p126 = scmp.eq.s32.totalorder %s15, 1
      %p127 = scmp.ne.s32.totalorder %s122, %s124
      %p128 = scmp.eq.s32.totalorder %s15, 0
      %p129 = por %p127, %p128
      %p130 = scmp.ne.s32.totalorder %s122, %s124
      %p131 = scmp.eq.s32.totalorder %s20, 1
      %p132 = por %p130, %p131
      %p133 = scmp.ne.s32.totalorder %s124, %s125
      %p134 = scmp.eq.s32.totalorder %s20, 0
      %p135 = por %p133, %p134
      %p136 = scmp.ne.s32.totalorder %s124, %s125
      %p137 = scmp.eq.s32.totalorder %s21, 1
      %p138 = por %p136, %p137
      %p140 = scmp.ne.s32.totalorder %s125, %s139
      %p141 = scmp.eq.s32.totalorder %s21, 0
      %p142 = por %p140, %p141
      %s144 = sadd.s32 %s143, 1
      %p147 = scmp.eq.s32.totalorder %s15, 1
      %p148 = scmp.ne.s32.totalorder %s143, %s145
      %p149 = scmp.eq.s32.totalorder %s15, 0
      %p150 = por %p148, %p149
      %p151 = scmp.ne.s32.totalorder %s143, %s145
      %p152 = scmp.eq.s32.totalorder %s20, 1
      %p153 = por %p151, %p152
      %p154 = scmp.ne.s32.totalorder %s145, %s146
      %p155 = scmp.eq.s32.totalorder %s20, 0
      %p156 = por %p154, %p155
      %p157 = scmp.ne.s32.totalorder %s145, %s146
      %p158 = scmp.eq.s32.totalorder %s21, 1
      %p159 = por %p157, %p158
      %p161 = scmp.ne.s32.totalorder %s146, %s160
      %p162 = scmp.eq.s32.totalorder %s21, 0
      %p163 = por %p161, %p162
      %s164 = ssub.s32 %s15, %s22
      %p165 = scmp.eq.s32.totalorder %s164, 0
      %s167 = sadd.s32 %s166, 1
      %s168 = scalar_select %p165, %s166, %s167
      %p171 = pneg %p165
      %p172 = scmp.eq.s32.totalorder %s15, 1
      %p173 = por %p171, %p172
      %p174 = scmp.ne.s32.totalorder %s166, %s169
      %p175 = scmp.eq.s32.totalorder %s15, 0
      %p176 = por %p174, %p175
      %p177 = scmp.ne.s32.totalorder %s166, %s169
      %p178 = scmp.eq.s32.totalorder %s20, 1
      %p179 = por %p177, %p178
      %p180 = scmp.ne.s32.totalorder %s169, %s170
      %p181 = scmp.eq.s32.totalorder %s20, 0
      %p182 = por %p180, %p181
      %p183 = scmp.ne.s32.totalorder %s169, %s170
      %p184 = scmp.eq.s32.totalorder %s21, 1
      %p185 = por %p183, %p184
      %p187 = scmp.ne.s32.totalorder %s170, %s186
      %p188 = scmp.eq.s32.totalorder %s21, 0
      %p189 = por %p187, %p188
      %p190 = scmp.le.s32.totalorder 1, %s15
      %p191 = scmp.lt.s32.totalorder %s15, 3
      %p192 = pnand %p190, %p191
      %p193 = pneg %p192
      // Predicated region
      $region9: #{tpu_custom_call.1} parent=5 // pred_check
        _
      $region10: #{tpu_custom_call.1} parent=5 // pred_check_branch
        %195 = sbr.rel (%p192) target = $region12
      $region11: #{tpu_custom_call.1} parent=5 // pred_region
        %s196 = ssub.s32 %s15, 1
        // Predicated region
        $region13: #{tpu_custom_call.1} parent=11 // pred_check
          %p197 = pneg %p114
        $region14: #{tpu_custom_call.1} parent=11 // pred_check_branch
          %199 = sbr.rel (%p197) target = $region16
        $region15: #{tpu_custom_call.1} parent=11 // pred_region
          _
        $region16: #{tpu_custom_call.1} parent=11 // pred_fallthru
          _
        // Predicated region
        $region17: #{tpu_custom_call.1} parent=11 // pred_check
          %p200 = pneg %p135
        $region18: #{tpu_custom_call.1} parent=11 // pred_check_branch
          %202 = sbr.rel (%p200) target = $region20
        $region19: #{tpu_custom_call.1} parent=11 // pred_region
          _
        $region20: #{tpu_custom_call.1} parent=11 // pred_fallthru
          _
        // Predicated region
        $region21: #{tpu_custom_call.1} parent=11 // pred_check
          %p203 = pneg %p156
        $region22: #{tpu_custom_call.1} parent=11 // pred_check_branch
          %205 = sbr.rel (%p203) target = $region24
        $region23: #{tpu_custom_call.1} parent=11 // pred_region
          _
        $region24: #{tpu_custom_call.1} parent=11 // pred_fallthru
          _
      $region12: #{tpu_custom_call.1} parent=5 // pred_fallthru
        _
      %p206 = scmp.lt.s32.totalorder %s15, 2
      // Predicated region
      $region25: #{tpu_custom_call.1} parent=5 // pred_check
        %p207 = pneg %p206
      $region26: #{tpu_custom_call.1} parent=5 // pred_check_branch
        %209 = sbr.rel (%p207) target = $region28
      $region27: #{tpu_custom_call.1} parent=5 // pred_region
        // Predicated region
        $region29: #{tpu_custom_call.1} parent=27 // pred_check
          %p210 = pneg %p35
        $region30: #{tpu_custom_call.1} parent=27 // pred_check_branch
          %212 = sbr.rel (%p210) target = $region32
        $region31: #{tpu_custom_call.1} parent=27 // pred_region
          %p213 = scmp.lt.s32.totalorder %s15, 1
          %s214 = scalar_select %p213, %s15, 1
          %s215 = smul.addr %s214, 8
          %s216 = scalar_lea.vmem %s0, %s215
        $region32: #{tpu_custom_call.1} parent=27 // pred_fallthru
          _
        // Predicated region
        $region33: #{tpu_custom_call.1} parent=27 // pred_check
          %p217 = pneg %p61
        $region34: #{tpu_custom_call.1} parent=27 // pred_check_branch
          %219 = sbr.rel (%p217) target = $region36
        $region35: #{tpu_custom_call.1} parent=27 // pred_region
          %p220 = scmp.lt.s32.totalorder %s15, 1
          %s221 = scalar_select %p220, %s15, 1
          %s222 = smul.addr %s221, 8
          %s223 = scalar_lea.vmem %s1, %s222
        $region36: #{tpu_custom_call.1} parent=27 // pred_fallthru
          _
        // Predicated region
        $region37: #{tpu_custom_call.1} parent=27 // pred_check
          %p224 = pneg %p87
        $region38: #{tpu_custom_call.1} parent=27 // pred_check_branch
          %226 = sbr.rel (%p224) target = $region40
        $region39: #{tpu_custom_call.1} parent=27 // pred_region
          %p227 = scmp.lt.s32.totalorder %s15, 1
          %s228 = scalar_select %p227, %s15, 1
          %s229 = smul.addr %s228, 8
          %s230 = scalar_lea.vmem %s2, %s229
        $region40: #{tpu_custom_call.1} parent=27 // pred_fallthru
          _
      $region28: #{tpu_custom_call.1} parent=5 // pred_fallthru
        _
      %p231 = scmp.le.s32.totalorder 1, %s15
      %p232 = scmp.lt.s32.totalorder %s15, 3
      %p233 = pnand %p231, %p232
      %p234 = pneg %p233
      // Predicated region
      $region41: #{tpu_custom_call.1} parent=5 // pred_check
        _
      $region42: #{tpu_custom_call.1} parent=5 // pred_check_branch
        %236 = sbr.rel (%p233) target = $region44
      $region43: #{tpu_custom_call.1} parent=5 // pred_region
        %s237 = ssub.s32 %s15, 1
        %p238 = scmp.lt.s32.totalorder %s20, 1
        %s239 = scalar_select %p238, %s20, 1
        %s240 = smul.addr %s239, 8
        %s241 = scalar_lea.vmem %s0, %s240
        %p242 = pneg %p41
        %p243 = pneg %p38
        %p244 = scmp.lt.s32.totalorder %s20, 1
        %s245 = scalar_select %p244, %s20, 1
        %s246 = smul.addr %s245, 8
        %s247 = scalar_lea.vmem %s1, %s246
        %p248 = pneg %p67
        %p249 = pneg %p64
        %p250 = scmp.lt.s32.totalorder %s20, 1
        %s251 = scalar_select %p250, %s20, 1
        %s252 = smul.addr %s251, 8
        %s253 = scalar_lea.vmem %s2, %s252
        %p254 = pneg %p93
        %p255 = pneg %p90
        %p256 = pneg %p114
        %p257 = pneg %p111
        %p258 = pneg %p135
        %p259 = pneg %p132
        %p260 = pneg %p156
        %p261 = pneg %p153
        %p262 = pneg %p182
        %p263 = pneg %p179
        %s264 = sand.u32 %s169, 1
        %s265 = scalar_lea.sflag [#allocation3], %s264
        %s266 = sand.u32 %s169, 1
        %s267 = smul.addr %s266, 8
        %s268 = scalar_lea.vmem [#allocation2], %s267
        %p269 = scmp.lt.s32.totalorder %s20, 1
        %s270 = scalar_select %p269, %s20, 1
        %s271 = smul.addr %s270, 8
        %s272 = scalar_lea.vmem %s0, %s271
        %p273 = scmp.lt.s32.totalorder %s20, 1
        %s274 = scalar_select %p273, %s20, 1
        %s275 = smul.addr %s274, 8
        %s276 = scalar_lea.vmem %s1, %s275
        %p277 = scmp.lt.s32.totalorder %s20, 1
        %s278 = scalar_select %p277, %s20, 1
        %s279 = smul.addr %s278, 8
        %s280 = scalar_lea.vmem %s2, %s279
        %v281 = vld [vmem:[%s272] sm:$0xff]
        %v282 = vld [vmem:[%s276] sm:$0xff]
        %v283 = vld [vmem:[%s280] sm:$0xff]
        %v284 = vld [vmem:[%s3] sm:$0xff]
        %v285 = vld [vmem:[%s3 + $0x8] sm:$0xff]
        %v286 = vld [vmem:[%s3 + $0x10] sm:$0xff]
        %v287 = vld [vmem:[%s3 + $0x18] sm:$0xff]
        %v288 = vld [vmem:[%s4] sm:$0x1]
        %v289 = vld [vmem:[%s5] sm:$0xff]
        %v290 = vld [vmem:[%s5 + $0x8] sm:$0xff]
        %v291 = vld [vmem:[%s5 + $0x10] sm:$0xff]
        %v292 = vld [vmem:[%s5 + $0x18] sm:$0xff]
        %v293 = vmul.f32 %v283, %v281
        %295 = vset.pattern.permute.xlu0 0
        %296 = vperm.xlu0 %295, %v282
        %v297 = vpop.permute.xlu0 %296
        %v300 = vlaneseq
        %v301 = vshrl.u32 %v300, 7
        %v302 = vsub.s32 0, %v301
        %v303 = vrot.slane %v288, %v302
        %v305 = vmul.f32 %v297, %v303
        %vm306 = vcmask 261120
        %v308 = vsel %vm306, %v293, 0
        %310 = vmatprep.subr.mxu0 0.0
        %311 = vmatpush1.msra.mxu0 %v284
        %312 = vmatprep.subr.mxu0 0.0
        %313 = vmatpush1.msra.mxu0 %v285
        %314 = vmatprep.subr.mxu0 0.0
        %315 = vmatpush1.msra.mxu0 %v286
        %316 = vmatprep.subr.mxu0 0.0
        %317 = vmatpush1.msra.mxu0 %v287
        %318 = vmatprep.subr.mxu0 0.0
        %319 = vmatpush1.msra.mxu0 0.0
        %320 = vmatprep.subr.mxu0 0.0
        %321 = vmatpush1.msra.mxu0 0.0
        %322 = vmatprep.subr.mxu0 0.0
        %323 = vmatpush1.msra.mxu0 0.0
        %324 = vmatprep.subr.mxu0 0.0
        %325 = vmatpush1.msra.mxu0 0.0
        %326 = vmatprep.subr.mxu0 0.0
        %327 = vmatpush1.msra.mxu0 0.0
        %328 = vmatprep.subr.mxu0 0.0
        %329 = vmatpush1.msra.mxu0 0.0
        %330 = vmatprep.subr.mxu0 0.0
        %331 = vmatpush1.msra.mxu0 0.0
        %332 = vmatprep.subr.mxu0 0.0
        %333 = vmatpush1.msra.mxu0 0.0
        %334 = vmatprep.subr.mxu0 0.0
        %335 = vmatpush1.msra.mxu0 0.0
        %336 = vmatprep.subr.mxu0 0.0
        %337 = vmatpush1.msra.mxu0 0.0
        %338 = vmatprep.subr.mxu0 0.0
        %339 = vmatpush1.msra.mxu0 0.0
        %340 = vmatprep.subr.mxu0 0.0
        %341 = vmatpush1.msra.mxu0 0.0
        %342 = vmatprep.subr.mxu0 0.0
        %343 = vmatpush1.msra.mxu0 0.0
        %344 = vmatprep.subr.mxu0 0.0
        %345 = vmatpush1.msra.mxu0 0.0
        %346 = vmatprep.subr.mxu0 0.0
        %347 = vmatpush1.msra.mxu0 0.0
        %348 = vmatprep.subr.mxu0 0.0
        %349 = vmatpush1.msra.mxu0 0.0
        %350 = vmatprep.subr.mxu0 0.0
        %351 = vmatpush1.msra.mxu0 0.0
        %352 = vmatprep.subr.mxu0 0.0
        %353 = vmatpush1.msra.mxu0 0.0
        %354 = vmatprep.subr.mxu0 0.0
        %355 = vmatpush1.msra.mxu0 0.0
        %356 = vmatprep.subr.mxu0 0.0
        %357 = vmatpush1.msra.mxu0 0.0
        %358 = vmatprep.subr.mxu0 0.0
        %359 = vmatpush1.msra.mxu0 0.0
        %360 = vmatprep.subr.mxu0 0.0
        %361 = vmatpush1.msra.mxu0 0.0
        %362 = vmatprep.subr.mxu0 0.0
        %363 = vmatpush1.msra.mxu0 0.0
        %364 = vmatprep.subr.mxu0 0.0
        %365 = vmatpush1.msra.mxu0 0.0
        %366 = vmatprep.subr.mxu0 0.0
        %367 = vmatpush1.msra.mxu0 0.0
        %368 = vmatprep.subr.mxu0 0.0
        %369 = vmatpush1.msra.mxu0 0.0
        %370 = vmatprep.subr.mxu0 0.0
        %371 = vmatpush1.msra.mxu0 0.0
        %372 = vmatprep.subr.mxu0 0.0
        %373 = vmatpush1.msra.mxu0 0.0
        %374 = vmatprep.mubr.f32.mxu0 0.0
        %375 = vmatmul.mubr.f32.gmra.mrb[0].mxu0 %v308
        %v376 = vpop.f32.mrb[0].mxu0
        %v377 = vadd.f32 %v305, %v376
        %v378 = vpop.f32.mrb[0].mxu0
        %379 = vdwg.mxu0
        %vm380 = vcmp.ge.f32.partialorder %v377, 0.0
        %v381 = vmul.f32 %v377, 0.2
        %v382 = vsel %vm380, %v377, %v381
        %v384 = vsel %vm306, %v382, 0
        %386 = vmatprep.subr.mxu0 0.0
        %387 = vmatpush1.msra.mxu0 %v289
        %388 = vmatprep.subr.mxu0 0.0
        %389 = vmatpush1.msra.mxu0 %v290
        %390 = vmatprep.subr.mxu0 0.0
        %391 = vmatpush1.msra.mxu0 %v291
        %392 = vmatprep.subr.mxu0 0.0
        %393 = vmatpush1.msra.mxu0 %v292
        %394 = vmatprep.subr.mxu0 0.0
        %395 = vmatpush1.msra.mxu0 0.0
        %396 = vmatprep.subr.mxu0 0.0
        %397 = vmatpush1.msra.mxu0 0.0
        %398 = vmatprep.subr.mxu0 0.0
        %399 = vmatpush1.msra.mxu0 0.0
        %400 = vmatprep.subr.mxu0 0.0
        %401 = vmatpush1.msra.mxu0 0.0
        %402 = vmatprep.subr.mxu0 0.0
        %403 = vmatpush1.msra.mxu0 0.0
        %404 = vmatprep.subr.mxu0 0.0
        %405 = vmatpush1.msra.mxu0 0.0
        %406 = vmatprep.subr.mxu0 0.0
        %407 = vmatpush1.msra.mxu0 0.0
        %408 = vmatprep.subr.mxu0 0.0
        %409 = vmatpush1.msra.mxu0 0.0
        %410 = vmatprep.subr.mxu0 0.0
        %411 = vmatpush1.msra.mxu0 0.0
        %412 = vmatprep.subr.mxu0 0.0
        %413 = vmatpush1.msra.mxu0 0.0
        %414 = vmatprep.subr.mxu0 0.0
        %415 = vmatpush1.msra.mxu0 0.0
        %416 = vmatprep.subr.mxu0 0.0
        %417 = vmatpush1.msra.mxu0 0.0
        %418 = vmatprep.subr.mxu0 0.0
        %419 = vmatpush1.msra.mxu0 0.0
        %420 = vmatprep.subr.mxu0 0.0
        %421 = vmatpush1.msra.mxu0 0.0
        %422 = vmatprep.subr.mxu0 0.0
        %423 = vmatpush1.msra.mxu0 0.0
        %424 = vmatprep.subr.mxu0 0.0
        %425 = vmatpush1.msra.mxu0 0.0
        %426 = vmatprep.subr.mxu0 0.0
        %427 = vmatpush1.msra.mxu0 0.0
        %428 = vmatprep.subr.mxu0 0.0
        %429 = vmatpush1.msra.mxu0 0.0
        %430 = vmatprep.subr.mxu0 0.0
        %431 = vmatpush1.msra.mxu0 0.0
        %432 = vmatprep.subr.mxu0 0.0
        %433 = vmatpush1.msra.mxu0 0.0
        %434 = vmatprep.subr.mxu0 0.0
        %435 = vmatpush1.msra.mxu0 0.0
        %436 = vmatprep.subr.mxu0 0.0
        %437 = vmatpush1.msra.mxu0 0.0
        %438 = vmatprep.subr.mxu0 0.0
        %439 = vmatpush1.msra.mxu0 0.0
        %440 = vmatprep.subr.mxu0 0.0
        %441 = vmatpush1.msra.mxu0 0.0
        %442 = vmatprep.subr.mxu0 0.0
        %443 = vmatpush1.msra.mxu0 0.0
        %444 = vmatprep.subr.mxu0 0.0
        %445 = vmatpush1.msra.mxu0 0.0
        %446 = vmatprep.subr.mxu0 0.0
        %447 = vmatpush1.msra.mxu0 0.0
        %448 = vmatprep.subr.mxu0 0.0
        %449 = vmatpush1.msra.mxu0 0.0
        %450 = vmatprep.mubr.f32.mxu0 0.0
        %451 = vmatmul.mubr.f32.gmra.mrb[0].mxu0 %v384
        %v452 = vpop.f32.mrb[0].mxu0
        %v453 = vadd.f32 0.0, %v452
        %v454 = vpop.f32.mrb[0].mxu0
        %455 = vdwg.mxu0
        %457 = vrot.lane.b32.xlu0 %v281, 96
        %v458 = vpop.permute.xlu0 %457
        %v460 = vmul.f32 %v283, %v458
        %461 = vset.pattern.permute.xlu0 1
        %462 = vperm.xlu0 %461, %v282
        %v463 = vpop.permute.xlu0 %462
        %v465 = vmul.f32 %v463, %v303
        %v467 = vsel %vm306, %v460, 0
        %469 = vmatprep.subr.mxu0 0.0
        %470 = vmatpush1.msra.mxu0 %v284
        %471 = vmatprep.subr.mxu0 0.0
        %472 = vmatpush1.msra.mxu0 %v285
        %473 = vmatprep.subr.mxu0 0.0
        %474 = vmatpush1.msra.mxu0 %v286
        %475 = vmatprep.subr.mxu0 0.0
        %476 = vmatpush1.msra.mxu0 %v287
        %477 = vmatprep.subr.mxu0 0.0
        %478 = vmatpush1.msra.mxu0 0.0
        %479 = vmatprep.subr.mxu0 0.0
        %480 = vmatpush1.msra.mxu0 0.0
        %481 = vmatprep.subr.mxu0 0.0
        %482 = vmatpush1.msra.mxu0 0.0
        %483 = vmatprep.subr.mxu0 0.0
        %484 = vmatpush1.msra.mxu0 0.0
        %485 = vmatprep.subr.mxu0 0.0
        %486 = vmatpush1.msra.mxu0 0.0
        %487 = vmatprep.subr.mxu0 0.0
        %488 = vmatpush1.msra.mxu0 0.0
        %489 = vmatprep.subr.mxu0 0.0
        %490 = vmatpush1.msra.mxu0 0.0
        %491 = vmatprep.subr.mxu0 0.0
        %492 = vmatpush1.msra.mxu0 0.0
        %493 = vmatprep.subr.mxu0 0.0
        %494 = vmatpush1.msra.mxu0 0.0
        %495 = vmatprep.subr.mxu0 0.0
        %496 = vmatpush1.msra.mxu0 0.0
        %497 = vmatprep.subr.mxu0 0.0
        %498 = vmatpush1.msra.mxu0 0.0
        %499 = vmatprep.subr.mxu0 0.0
        %500 = vmatpush1.msra.mxu0 0.0
        %501 = vmatprep.subr.mxu0 0.0
        %502 = vmatpush1.msra.mxu0 0.0
        %503 = vmatprep.subr.mxu0 0.0
        %504 = vmatpush1.msra.mxu0 0.0
        %505 = vmatprep.subr.mxu0 0.0
        %506 = vmatpush1.msra.mxu0 0.0
        %507 = vmatprep.subr.mxu0 0.0
        %508 = vmatpush1.msra.mxu0 0.0
        %509 = vmatprep.subr.mxu0 0.0
        %510 = vmatpush1.msra.mxu0 0.0
        %511 = vmatprep.subr.mxu0 0.0
        %512 = vmatpush1.msra.mxu0 0.0
        %513 = vmatprep.subr.mxu0 0.0
        %514 = vmatpush1.msra.mxu0 0.0
        %515 = vmatprep.subr.mxu0 0.0
        %516 = vmatpush1.msra.mxu0 0.0
        %517 = vmatprep.subr.mxu0 0.0
        %518 = vmatpush1.msra.mxu0 0.0
        %519 = vmatprep.subr.mxu0 0.0
        %520 = vmatpush1.msra.mxu0 0.0
        %521 = vmatprep.subr.mxu0 0.0
        %522 = vmatpush1.msra.mxu0 0.0
        %523 = vmatprep.subr.mxu0 0.0
        %524 = vmatpush1.msra.mxu0 0.0
        %525 = vmatprep.subr.mxu0 0.0
        %526 = vmatpush1.msra.mxu0 0.0
        %527 = vmatprep.subr.mxu0 0.0
        %528 = vmatpush1.msra.mxu0 0.0
        %529 = vmatprep.subr.mxu0 0.0
        %530 = vmatpush1.msra.mxu0 0.0
        %531 = vmatprep.subr.mxu0 0.0
        %532 = vmatpush1.msra.mxu0 0.0
        %533 = vmatprep.mubr.f32.mxu0 0.0
        %534 = vmatmul.mubr.f32.gmra.mrb[0].mxu0 %v467
        %v535 = vpop.f32.mrb[0].mxu0
        %v536 = vadd.f32 %v465, %v535
        %v537 = vpop.f32.mrb[0].mxu0
        %538 = vdwg.mxu0
        %vm539 = vcmp.ge.f32.partialorder %v536, 0.0
        %v540 = vmul.f32 %v536, 0.2
        %v541 = vsel %vm539, %v536, %v540
        %v543 = vsel %vm306, %v541, 0
        %545 = vmatprep.subr.mxu0 0.0
        %546 = vmatpush1.msra.mxu0 %v289
        %547 = vmatprep.subr.mxu0 0.0
        %548 = vmatpush1.msra.mxu0 %v290
        %549 = vmatprep.subr.mxu0 0.0
        %550 = vmatpush1.msra.mxu0 %v291
        %551 = vmatprep.subr.mxu0 0.0
        %552 = vmatpush1.msra.mxu0 %v292
        %553 = vmatprep.subr.mxu0 0.0
        %554 = vmatpush1.msra.mxu0 0.0
        %555 = vmatprep.subr.mxu0 0.0
        %556 = vmatpush1.msra.mxu0 0.0
        %557 = vmatprep.subr.mxu0 0.0
        %558 = vmatpush1.msra.mxu0 0.0
        %559 = vmatprep.subr.mxu0 0.0
        %560 = vmatpush1.msra.mxu0 0.0
        %561 = vmatprep.subr.mxu0 0.0
        %562 = vmatpush1.msra.mxu0 0.0
        %563 = vmatprep.subr.mxu0 0.0
        %564 = vmatpush1.msra.mxu0 0.0
        %565 = vmatprep.subr.mxu0 0.0
        %566 = vmatpush1.msra.mxu0 0.0
        %567 = vmatprep.subr.mxu0 0.0
        %568 = vmatpush1.msra.mxu0 0.0
        %569 = vmatprep.subr.mxu0 0.0
        %570 = vmatpush1.msra.mxu0 0.0
        %571 = vmatprep.subr.mxu0 0.0
        %572 = vmatpush1.msra.mxu0 0.0
        %573 = vmatprep.subr.mxu0 0.0
        %574 = vmatpush1.msra.mxu0 0.0
        %575 = vmatprep.subr.mxu0 0.0
        %576 = vmatpush1.msra.mxu0 0.0
        %577 = vmatprep.subr.mxu0 0.0
        %578 = vmatpush1.msra.mxu0 0.0
        %579 = vmatprep.subr.mxu0 0.0
        %580 = vmatpush1.msra.mxu0 0.0
        %581 = vmatprep.subr.mxu0 0.0
        %582 = vmatpush1.msra.mxu0 0.0
        %583 = vmatprep.subr.mxu0 0.0
        %584 = vmatpush1.msra.mxu0 0.0
        %585 = vmatprep.subr.mxu0 0.0
        %586 = vmatpush1.msra.mxu0 0.0
        %587 = vmatprep.subr.mxu0 0.0
        %588 = vmatpush1.msra.mxu0 0.0
        %589 = vmatprep.subr.mxu0 0.0
        %590 = vmatpush1.msra.mxu0 0.0
        %591 = vmatprep.subr.mxu0 0.0
        %592 = vmatpush1.msra.mxu0 0.0
        %593 = vmatprep.subr.mxu0 0.0
        %594 = vmatpush1.msra.mxu0 0.0
        %595 = vmatprep.subr.mxu0 0.0
        %596 = vmatpush1.msra.mxu0 0.0
        %597 = vmatprep.subr.mxu0 0.0
        %598 = vmatpush1.msra.mxu0 0.0
        %599 = vmatprep.subr.mxu0 0.0
        %600 = vmatpush1.msra.mxu0 0.0
        %601 = vmatprep.subr.mxu0 0.0
        %602 = vmatpush1.msra.mxu0 0.0
        %603 = vmatprep.subr.mxu0 0.0
        %604 = vmatpush1.msra.mxu0 0.0
        %605 = vmatprep.subr.mxu0 0.0
        %606 = vmatpush1.msra.mxu0 0.0
        %607 = vmatprep.subr.mxu0 0.0
        %608 = vmatpush1.msra.mxu0 0.0
        %609 = vmatprep.mubr.f32.mxu0 0.0
        %610 = vmatmul.mubr.f32.gmra.mrb[0].mxu0 %v543
        %v611 = vpop.f32.mrb[0].mxu0
        %v612 = vadd.f32 0.0, %v611
        %v613 = vpop.f32.mrb[0].mxu0
        %614 = vdwg.mxu0
        %615 = vrot.lane.b32.xlu0 %v281, 64
        %v616 = vpop.permute.xlu0 %615
        %v618 = vmul.f32 %v283, %v616
        %619 = vset.pattern.permute.xlu0 2
        %620 = vperm.xlu0 %619, %v282
        %v621 = vpop.permute.xlu0 %620
        %v623 = vmul.f32 %v621, %v303
        %v625 = vsel %vm306, %v618, 0
        %627 = vmatprep.subr.mxu0 0.0
        %628 = vmatpush1.msra.mxu0 %v284
        %629 = vmatprep.subr.mxu0 0.0
        %630 = vmatpush1.msra.mxu0 %v285
        %631 = vmatprep.subr.mxu0 0.0
        %632 = vmatpush1.msra.mxu0 %v286
        %633 = vmatprep.subr.mxu0 0.0
        %634 = vmatpush1.msra.mxu0 %v287
        %635 = vmatprep.subr.mxu0 0.0
        %636 = vmatpush1.msra.mxu0 0.0
        %637 = vmatprep.subr.mxu0 0.0
        %638 = vmatpush1.msra.mxu0 0.0
        %639 = vmatprep.subr.mxu0 0.0
        %640 = vmatpush1.msra.mxu0 0.0
        %641 = vmatprep.subr.mxu0 0.0
        %642 = vmatpush1.msra.mxu0 0.0
        %643 = vmatprep.subr.mxu0 0.0
        %644 = vmatpush1.msra.mxu0 0.0
        %645 = vmatprep.subr.mxu0 0.0
        %646 = vmatpush1.msra.mxu0 0.0
        %647 = vmatprep.subr.mxu0 0.0
        %648 = vmatpush1.msra.mxu0 0.0
        %649 = vmatprep.subr.mxu0 0.0
        %650 = vmatpush1.msra.mxu0 0.0
        %651 = vmatprep.subr.mxu0 0.0
        %652 = vmatpush1.msra.mxu0 0.0
        %653 = vmatprep.subr.mxu0 0.0
        %654 = vmatpush1.msra.mxu0 0.0
        %655 = vmatprep.subr.mxu0 0.0
        %656 = vmatpush1.msra.mxu0 0.0
        %657 = vmatprep.subr.mxu0 0.0
        %658 = vmatpush1.msra.mxu0 0.0
        %659 = vmatprep.subr.mxu0 0.0
        %660 = vmatpush1.msra.mxu0 0.0
        %661 = vmatprep.subr.mxu0 0.0
        %662 = vmatpush1.msra.mxu0 0.0
        %663 = vmatprep.subr.mxu0 0.0
        %664 = vmatpush1.msra.mxu0 0.0
        %665 = vmatprep.subr.mxu0 0.0
        %666 = vmatpush1.msra.mxu0 0.0
        %667 = vmatprep.subr.mxu0 0.0
        %668 = vmatpush1.msra.mxu0 0.0
        %669 = vmatprep.subr.mxu0 0.0
        %670 = vmatpush1.msra.mxu0 0.0
        %671 = vmatprep.subr.mxu0 0.0
        %672 = vmatpush1.msra.mxu0 0.0
        %673 = vmatprep.subr.mxu0 0.0
        %674 = vmatpush1.msra.mxu0 0.0
        %675 = vmatprep.subr.mxu0 0.0
        %676 = vmatpush1.msra.mxu0 0.0
        %677 = vmatprep.subr.mxu0 0.0
        %678 = vmatpush1.msra.mxu0 0.0
        %679 = vmatprep.subr.mxu0 0.0
        %680 = vmatpush1.msra.mxu0 0.0
        %681 = vmatprep.subr.mxu0 0.0
        %682 = vmatpush1.msra.mxu0 0.0
        %683 = vmatprep.subr.mxu0 0.0
        %684 = vmatpush1.msra.mxu0 0.0
        %685 = vmatprep.subr.mxu0 0.0
        %686 = vmatpush1.msra.mxu0 0.0
        %687 = vmatprep.subr.mxu0 0.0
        %688 = vmatpush1.msra.mxu0 0.0
        %689 = vmatprep.subr.mxu0 0.0
        %690 = vmatpush1.msra.mxu0 0.0
        %691 = vmatprep.mubr.f32.mxu0 0.0
        %692 = vmatmul.mubr.f32.gmra.mrb[0].mxu0 %v625
        %v693 = vpop.f32.mrb[0].mxu0
        %v694 = vadd.f32 %v623, %v693
        %v695 = vpop.f32.mrb[0].mxu0
        %696 = vdwg.mxu0
        %vm697 = vcmp.ge.f32.partialorder %v694, 0.0
        %v698 = vmul.f32 %v694, 0.2
        %v699 = vsel %vm697, %v694, %v698
        %v701 = vsel %vm306, %v699, 0
        %703 = vmatprep.subr.mxu0 0.0
        %704 = vmatpush1.msra.mxu0 %v289
        %705 = vmatprep.subr.mxu0 0.0
        %706 = vmatpush1.msra.mxu0 %v290
        %707 = vmatprep.subr.mxu0 0.0
        %708 = vmatpush1.msra.mxu0 %v291
        %709 = vmatprep.subr.mxu0 0.0
        %710 = vmatpush1.msra.mxu0 %v292
        %711 = vmatprep.subr.mxu0 0.0
        %712 = vmatpush1.msra.mxu0 0.0
        %713 = vmatprep.subr.mxu0 0.0
        %714 = vmatpush1.msra.mxu0 0.0
        %715 = vmatprep.subr.mxu0 0.0
        %716 = vmatpush1.msra.mxu0 0.0
        %717 = vmatprep.subr.mxu0 0.0
        %718 = vmatpush1.msra.mxu0 0.0
        %719 = vmatprep.subr.mxu0 0.0
        %720 = vmatpush1.msra.mxu0 0.0
        %721 = vmatprep.subr.mxu0 0.0
        %722 = vmatpush1.msra.mxu0 0.0
        %723 = vmatprep.subr.mxu0 0.0
        %724 = vmatpush1.msra.mxu0 0.0
        %725 = vmatprep.subr.mxu0 0.0
        %726 = vmatpush1.msra.mxu0 0.0
        %727 = vmatprep.subr.mxu0 0.0
        %728 = vmatpush1.msra.mxu0 0.0
        %729 = vmatprep.subr.mxu0 0.0
        %730 = vmatpush1.msra.mxu0 0.0
        %731 = vmatprep.subr.mxu0 0.0
        %732 = vmatpush1.msra.mxu0 0.0
        %733 = vmatprep.subr.mxu0 0.0
        %734 = vmatpush1.msra.mxu0 0.0
        %735 = vmatprep.subr.mxu0 0.0
        %736 = vmatpush1.msra.mxu0 0.0
        %737 = vmatprep.subr.mxu0 0.0
        %738 = vmatpush1.msra.mxu0 0.0
        %739 = vmatprep.subr.mxu0 0.0
        %740 = vmatpush1.msra.mxu0 0.0
        %741 = vmatprep.subr.mxu0 0.0
        %742 = vmatpush1.msra.mxu0 0.0
        %743 = vmatprep.subr.mxu0 0.0
        %744 = vmatpush1.msra.mxu0 0.0
        %745 = vmatprep.subr.mxu0 0.0
        %746 = vmatpush1.msra.mxu0 0.0
        %747 = vmatprep.subr.mxu0 0.0
        %748 = vmatpush1.msra.mxu0 0.0
        %749 = vmatprep.subr.mxu0 0.0
        %750 = vmatpush1.msra.mxu0 0.0
        %751 = vmatprep.subr.mxu0 0.0
        %752 = vmatpush1.msra.mxu0 0.0
        %753 = vmatprep.subr.mxu0 0.0
        %754 = vmatpush1.msra.mxu0 0.0
        %755 = vmatprep.subr.mxu0 0.0
        %756 = vmatpush1.msra.mxu0 0.0
        %757 = vmatprep.subr.mxu0 0.0
        %758 = vmatpush1.msra.mxu0 0.0
        %759 = vmatprep.subr.mxu0 0.0
        %760 = vmatpush1.msra.mxu0 0.0
        %761 = vmatprep.subr.mxu0 0.0
        %762 = vmatpush1.msra.mxu0 0.0
        %763 = vmatprep.subr.mxu0 0.0
        %764 = vmatpush1.msra.mxu0 0.0
        %765 = vmatprep.subr.mxu0 0.0
        %766 = vmatpush1.msra.mxu0 0.0
        %767 = vmatprep.mubr.f32.mxu0 0.0
        %768 = vmatmul.mubr.f32.gmra.mrb[0].mxu0 %v701
        %v769 = vpop.f32.mrb[0].mxu0
        %v770 = vadd.f32 0.0, %v769
        %v771 = vpop.f32.mrb[0].mxu0
        %772 = vdwg.mxu0
        %773 = vrot.lane.b32.xlu0 %v281, 32
        %v774 = vpop.permute.xlu0 %773
        %v776 = vmul.f32 %v283, %v774
        %777 = vset.pattern.permute.xlu0 3
        %778 = vperm.xlu0 %777, %v282
        %v779 = vpop.permute.xlu0 %778
        %v781 = vmul.f32 %v779, %v303
        %v783 = vsel %vm306, %v776, 0
        %785 = vmatprep.subr.mxu0 0.0
        %786 = vmatpush1.msra.mxu0 %v284
        %787 = vmatprep.subr.mxu0 0.0
        %788 = vmatpush1.msra.mxu0 %v285
        %789 = vmatprep.subr.mxu0 0.0
        %790 = vmatpush1.msra.mxu0 %v286
        %791 = vmatprep.subr.mxu0 0.0
        %792 = vmatpush1.msra.mxu0 %v287
        %793 = vmatprep.subr.mxu0 0.0
        %794 = vmatpush1.msra.mxu0 0.0
        %795 = vmatprep.subr.mxu0 0.0
        %796 = vmatpush1.msra.mxu0 0.0
        %797 = vmatprep.subr.mxu0 0.0
        %798 = vmatpush1.msra.mxu0 0.0
        %799 = vmatprep.subr.mxu0 0.0
        %800 = vmatpush1.msra.mxu0 0.0
        %801 = vmatprep.subr.mxu0 0.0
        %802 = vmatpush1.msra.mxu0 0.0
        %803 = vmatprep.subr.mxu0 0.0
        %804 = vmatpush1.msra.mxu0 0.0
        %805 = vmatprep.subr.mxu0 0.0
        %806 = vmatpush1.msra.mxu0 0.0
        %807 = vmatprep.subr.mxu0 0.0
        %808 = vmatpush1.msra.mxu0 0.0
        %809 = vmatprep.subr.mxu0 0.0
        %810 = vmatpush1.msra.mxu0 0.0
        %811 = vmatprep.subr.mxu0 0.0
        %812 = vmatpush1.msra.mxu0 0.0
        %813 = vmatprep.subr.mxu0 0.0
        %814 = vmatpush1.msra.mxu0 0.0
        %815 = vmatprep.subr.mxu0 0.0
        %816 = vmatpush1.msra.mxu0 0.0
        %817 = vmatprep.subr.mxu0 0.0
        %818 = vmatpush1.msra.mxu0 0.0
        %819 = vmatprep.subr.mxu0 0.0
        %820 = vmatpush1.msra.mxu0 0.0
        %821 = vmatprep.subr.mxu0 0.0
        %822 = vmatpush1.msra.mxu0 0.0
        %823 = vmatprep.subr.mxu0 0.0
        %824 = vmatpush1.msra.mxu0 0.0
        %825 = vmatprep.subr.mxu0 0.0
        %826 = vmatpush1.msra.mxu0 0.0
        %827 = vmatprep.subr.mxu0 0.0
        %828 = vmatpush1.msra.mxu0 0.0
        %829 = vmatprep.subr.mxu0 0.0
        %830 = vmatpush1.msra.mxu0 0.0
        %831 = vmatprep.subr.mxu0 0.0
        %832 = vmatpush1.msra.mxu0 0.0
        %833 = vmatprep.subr.mxu0 0.0
        %834 = vmatpush1.msra.mxu0 0.0
        %835 = vmatprep.subr.mxu0 0.0
        %836 = vmatpush1.msra.mxu0 0.0
        %837 = vmatprep.subr.mxu0 0.0
        %838 = vmatpush1.msra.mxu0 0.0
        %839 = vmatprep.subr.mxu0 0.0
        %840 = vmatpush1.msra.mxu0 0.0
        %841 = vmatprep.subr.mxu0 0.0
        %842 = vmatpush1.msra.mxu0 0.0
        %843 = vmatprep.subr.mxu0 0.0
        %844 = vmatpush1.msra.mxu0 0.0
        %845 = vmatprep.subr.mxu0 0.0
        %846 = vmatpush1.msra.mxu0 0.0
        %847 = vmatprep.subr.mxu0 0.0
        %848 = vmatpush1.msra.mxu0 0.0
        %849 = vmatprep.mubr.f32.mxu0 0.0
        %850 = vmatmul.mubr.f32.gmra.mrb[0].mxu0 %v783
        %v851 = vpop.f32.mrb[0].mxu0
        %v852 = vadd.f32 %v781, %v851
        %v853 = vpop.f32.mrb[0].mxu0
        %854 = vdwg.mxu0
        %vm855 = vcmp.ge.f32.partialorder %v852, 0.0
        %v856 = vmul.f32 %v852, 0.2
        %v857 = vsel %vm855, %v852, %v856
        %v859 = vsel %vm306, %v857, 0
        %861 = vmatprep.subr.mxu0 0.0
        %862 = vmatpush1.msra.mxu0 %v289
        %863 = vmatprep.subr.mxu0 0.0
        %864 = vmatpush1.msra.mxu0 %v290
        %865 = vmatprep.subr.mxu0 0.0
        %866 = vmatpush1.msra.mxu0 %v291
        %867 = vmatprep.subr.mxu0 0.0
        %868 = vmatpush1.msra.mxu0 %v292
        %869 = vmatprep.subr.mxu0 0.0
        %870 = vmatpush1.msra.mxu0 0.0
        %871 = vmatprep.subr.mxu0 0.0
        %872 = vmatpush1.msra.mxu0 0.0
        %873 = vmatprep.subr.mxu0 0.0
        %874 = vmatpush1.msra.mxu0 0.0
        %875 = vmatprep.subr.mxu0 0.0
        %876 = vmatpush1.msra.mxu0 0.0
        %877 = vmatprep.subr.mxu0 0.0
        %878 = vmatpush1.msra.mxu0 0.0
        %879 = vmatprep.subr.mxu0 0.0
        %880 = vmatpush1.msra.mxu0 0.0
        %881 = vmatprep.subr.mxu0 0.0
        %882 = vmatpush1.msra.mxu0 0.0
        %883 = vmatprep.subr.mxu0 0.0
        %884 = vmatpush1.msra.mxu0 0.0
        %885 = vmatprep.subr.mxu0 0.0
        %886 = vmatpush1.msra.mxu0 0.0
        %887 = vmatprep.subr.mxu0 0.0
        %888 = vmatpush1.msra.mxu0 0.0
        %889 = vmatprep.subr.mxu0 0.0
        %890 = vmatpush1.msra.mxu0 0.0
        %891 = vmatprep.subr.mxu0 0.0
        %892 = vmatpush1.msra.mxu0 0.0
        %893 = vmatprep.subr.mxu0 0.0
        %894 = vmatpush1.msra.mxu0 0.0
        %895 = vmatprep.subr.mxu0 0.0
        %896 = vmatpush1.msra.mxu0 0.0
        %897 = vmatprep.subr.mxu0 0.0
        %898 = vmatpush1.msra.mxu0 0.0
        %899 = vmatprep.subr.mxu0 0.0
        %900 = vmatpush1.msra.mxu0 0.0
        %901 = vmatprep.subr.mxu0 0.0
        %902 = vmatpush1.msra.mxu0 0.0
        %903 = vmatprep.subr.mxu0 0.0
        %904 = vmatpush1.msra.mxu0 0.0
        %905 = vmatprep.subr.mxu0 0.0
        %906 = vmatpush1.msra.mxu0 0.0
        %907 = vmatprep.subr.mxu0 0.0
        %908 = vmatpush1.msra.mxu0 0.0
        %909 = vmatprep.subr.mxu0 0.0
        %910 = vmatpush1.msra.mxu0 0.0
        %911 = vmatprep.subr.mxu0 0.0
        %912 = vmatpush1.msra.mxu0 0.0
        %913 = vmatprep.subr.mxu0 0.0
        %914 = vmatpush1.msra.mxu0 0.0
        %915 = vmatprep.subr.mxu0 0.0
        %916 = vmatpush1.msra.mxu0 0.0
        %917 = vmatprep.subr.mxu0 0.0
        %918 = vmatpush1.msra.mxu0 0.0
        %919 = vmatprep.subr.mxu0 0.0
        %920 = vmatpush1.msra.mxu0 0.0
        %921 = vmatprep.subr.mxu0 0.0
        %922 = vmatpush1.msra.mxu0 0.0
        %923 = vmatprep.subr.mxu0 0.0
        %924 = vmatpush1.msra.mxu0 0.0
        %925 = vmatprep.mubr.f32.mxu0 0.0
        %926 = vmatmul.mubr.f32.gmra.mrb[0].mxu0 %v859
        %v927 = vpop.f32.mrb[0].mxu0
        %v928 = vadd.f32 0.0, %v927
        %v929 = vpop.f32.mrb[0].mxu0
        %930 = vdwg.mxu0
        %v931 = vmax.f32 %v453, %v612
        %v932 = vmax.f32 %v931, %v770
        %v933 = vmax.f32 %v932, %v928
        %v934 = vsub.f32 %v453, %v933
        %v935 = vmul.f32 %v934, 1.442695
        %v936 = vpow.pop %v935
        %v937 = vsub.f32 %v612, %v933
        %v938 = vmul.f32 %v937, 1.442695
        %v939 = vpow.pop %v938
        %v940 = vsub.f32 %v770, %v933
        %v941 = vmul.f32 %v940, 1.442695
        %v942 = vpow.pop %v941
        %v943 = vsub.f32 %v928, %v933
        %v944 = vmul.f32 %v943, 1.442695
        %v945 = vpow.pop %v944
        %v946 = vadd.f32 %v936, %v939
        %v947 = vadd.f32 %v946, %v942
        %v948 = vadd.f32 %v947, %v945
        %v949 = vrcp.pop %v948
        %v950 = vmul.f32 %v936, %v949
        %952 = vset.pattern.permute.xlu0 0
        %953 = vperm.xlu0 %952, %v950
        %v954 = vpop.permute.xlu0 %953
        %v956 = vmul.f32 %v954, %v281
        %v957 = vmul.f32 %v939, %v949
        %959 = vset.pattern.permute.xlu0 0
        %960 = vperm.xlu0 %959, %v957
        %v961 = vpop.permute.xlu0 %960
        %v963 = vmul.f32 %v961, %v281
        %965 = vrot.lane.b32.xlu0 %v963, 96
        %v966 = vpop.permute.xlu0 %965
        %v968 = vadd.f32 %v956, %v966
        %v969 = vmul.f32 %v942, %v949
        %971 = vset.pattern.permute.xlu0 0
        %972 = vperm.xlu0 %971, %v969
        %v973 = vpop.permute.xlu0 %972
        %v975 = vmul.f32 %v973, %v281
        %977 = vrot.lane.b32.xlu0 %v975, 64
        %v978 = vpop.permute.xlu0 %977
        %v980 = vadd.f32 %v968, %v978
        %v981 = vmul.f32 %v945, %v949
        %983 = vset.pattern.permute.xlu0 0
        %984 = vperm.xlu0 %983, %v981
        %v985 = vpop.permute.xlu0 %984
        %v987 = vmul.f32 %v985, %v281
        %989 = vrot.lane.b32.xlu0 %v987, 32
        %v990 = vpop.permute.xlu0 %989
        %v992 = vadd.f32 %v980, %v990
        %993 = vst.msk [vmem:[%s268] sm:$0xff] %vm306, %v992
        %s994 = sand.u32 %s169, 1
        %s995 = scalar_lea.sflag [#allocation3], %s994
        %s996 = sand.u32 %s169, 1
        %s997 = smul.addr %s996, 8
        %s998 = scalar_lea.vmem [#allocation2], %s997
        // Predicated region
        $region45: #{tpu_custom_call.1} parent=43 // pred_check
          %p999 = pneg %p179
        $region46: #{tpu_custom_call.1} parent=43 // pred_check_branch
          %1001 = sbr.rel (%p999) target = $region48
        $region47: #{tpu_custom_call.1} parent=43 // pred_region
          %s1003 = ssub.s32 128, 128
          %1004 = vsyncadd %s995, %s1003
          %s1005 = smul.addr %s20, 128
          %s1006 = scalar_lea.hbm %s6, %s1005
          %s1008 = sshll.u32 %s998, 4
          %s1009 = int_to_ptr.vmem [resolvable:$true] %s1008
          %1011 = dma.vmem_to_hbm [thread:$0]  %s1009, 128, %s1006, %s995
        $region48: #{tpu_custom_call.1} parent=43 // pred_fallthru
          _
      $region44: #{tpu_custom_call.1} parent=5 // pred_fallthru
        _
      %p1012 = scmp.le.s32.totalorder 2, %s15
      // Predicated region
      $region49: #{tpu_custom_call.1} parent=5 // pred_check
        %p1013 = pneg %p1012
      $region50: #{tpu_custom_call.1} parent=5 // pred_check_branch
        %1015 = sbr.rel (%p1013) target = $region52
      $region51: #{tpu_custom_call.1} parent=5 // pred_region
        %s1016 = ssub.s32 %s15, 2
        // Predicated region
        $region53: #{tpu_custom_call.1} parent=51 // pred_check
          %p1017 = pneg %p185
        $region54: #{tpu_custom_call.1} parent=51 // pred_check_branch
          %1019 = sbr.rel (%p1017) target = $region56
        $region55: #{tpu_custom_call.1} parent=51 // pred_region
          %s1020 = sand.u32 %s170, 1
          %s1021 = scalar_lea.sflag [#allocation3], %s1020
          %s1022 = sand.u32 %s170, 1
          %s1023 = smul.addr %s1022, 8
          %s1024 = scalar_lea.vmem [#allocation2], %s1023
          %1025 = dma.done %s1021, 128
        $region56: #{tpu_custom_call.1} parent=51 // pred_fallthru
          _
      $region52: #{tpu_custom_call.1} parent=5 // pred_fallthru
        _
    $region6: #{tpu_custom_call.1} parent=1 // loop_footer
      %s19 = sadd.s32 1, %s15
    $region7: #{tpu_custom_call.1} parent=1 // loop_footer_branch
      %14 = sbr.rel target = $region3
    $region8: #{tpu_custom_call.1} parent=1 // loop_exit
      _
    %1026 = vsyncpa [#allocation3], 1
    %s1027 = scalar_lea.sflag [#allocation3], 1
    %1028 = vsyncpa %s1027, 1

</llo_original>
